<compile_context>
chip_gen: v5e
topology: v5e:2x2
jax: 0.10.0
libtpu: 0.0.40
codegen_flags: <defaults>
</compile_context>

<pallas_src>
import functools

import numpy as np
import jax
import jax.numpy as jnp
from jax import lax
from jax.experimental import pallas as pl
from jax.experimental.pallas import tpu as pltpu

_NEG = np.float32(-1e30)  # score padding: always below any confidence threshold


def _round_up(x, m):
    return ((x + m - 1) // m) * m


def _pick_tile(n, cap=32768):
    """Largest lane tile (multiple of 128) for the elementwise decode kernel."""
    if n <= cap:
        return n
    for t in (32768, 16384, 8192, 4096, 2048, 1024, 512, 256, 128):
        if n % t == 0:
            return t
    return 128  # n is always a multiple of 128 here


def _vmem_limit_bytes():
    """Scoped-VMEM limit derived from the actual chip, with headroom for
    double-buffered I/O blocks (working sets here are only a few MiB)."""
    try:
        cap = int(getattr(pltpu.get_tpu_info(), "vmem_capacity_bytes", 64 << 20))
    except Exception:
        cap = 64 << 20
    return int(max(32 << 20, min(cap // 2, 128 << 20)))


# --------------------------------------------------------------------------
# Kernel 1: BBoxTransform + ClipBoxes (elementwise over anchors, tiled on A)
# --------------------------------------------------------------------------
def _decode_clip_kernel(ar_ref, out_ref, *, img_w, img_h):
    # ar_ref: (8, T) -- rows 0..3 = anchors (x1,y1,x2,y2), rows 4..7 = (dx,dy,dw,dh)
    xy1 = ar_ref[0:2, :]
    xy2 = ar_ref[2:4, :]
    wh = xy2 - xy1                        # (2, T): widths, heights
    ctr = xy1 + 0.5 * wh                  # (2, T): ctr_x, ctr_y

    # BBoxTransform defaults: mean = 0, std = (0.1, 0.1, 0.2, 0.2)
    dxy = ar_ref[4:6, :] * 0.1
    dwh = ar_ref[6:8, :] * 0.2

    pred_ctr = ctr + dxy * wh
    pred_wh = jnp.exp(dwh) * wh

    p1 = pred_ctr - 0.5 * pred_wh         # (2, T): x1, y1
    p2 = pred_ctr + 0.5 * pred_wh         # (2, T): x2, y2

    # ClipBoxes: x1,y1 >= 0 ; x2 <= W ; y2 <= H   (static sublane-slice stores)
    out_ref[0:2, :] = jnp.maximum(p1, 0.0)
    out_ref[2:3, :] = jnp.minimum(p2[0:1, :], jnp.float32(img_w))
    out_ref[3:4, :] = jnp.minimum(p2[1:2, :], jnp.float32(img_h))


def _decode_and_clip(anc_reg, img_w, img_h):
    """anc_reg: (8, Ap) f32 (Ap multiple of 128) -> boxes (4, Ap)."""
    _, Ap = anc_reg.shape
    ta = _pick_tile(Ap)
    kern = functools.partial(_decode_clip_kernel,
                             img_w=float(img_w), img_h=float(img_h))
    return pl.pallas_call(
        kern,
        out_shape=jax.ShapeDtypeStruct((4, Ap), jnp.float32),
        grid=(Ap // ta,),
        in_specs=[pl.BlockSpec((8, ta), lambda i: (0, i))],
        out_specs=pl.BlockSpec((4, ta), lambda i: (0, i)),
        compiler_params=pltpu.CompilerParams(
            dimension_semantics=("parallel",),
            vmem_limit_bytes=_vmem_limit_bytes()),
    )(anc_reg)


# --------------------------------------------------------------------------
# Kernel 2: per-class confidence threshold + greedy NMS (all classes, one call)
# --------------------------------------------------------------------------
def _nms_kernel(boxes_ref, scores_ref, keep_ref, *, conf_thr, iou_thr):
    # boxes_ref : (4, K) coord-major boxes of this class, sorted by descending score
    # scores_ref: (1, K) sorted scores (padding lanes carry -1e30)
    # keep_ref  : (1, K) output keep mask (1.0 = kept)
    K = scores_ref.shape[1]

    x1 = boxes_ref[0:1, :]
    y1 = boxes_ref[1:2, :]
    x2 = boxes_ref[2:3, :]
    y2 = boxes_ref[3:4, :]
    area = (x2 - x1) * (y2 - y1)                            # (1, K)

    # Confidence threshold initializes the keep mask (padded lanes stay 0).
    valid = scores_ref[...] > jnp.float32(conf_thr)
    keep_ref[...] = valid.astype(jnp.float32)

    # Scores are sorted descending, so greedy NMS only needs to visit the
    # above-threshold prefix -- typically tens of candidates, not K.
    n_valid = jnp.sum(valid.astype(jnp.int32))

    lane_ids = lax.broadcasted_iota(jnp.int32, (1, K), 1)   # hoisted out of loop

    def body(i, carry):
        sel = lane_ids == i
        # keep[i]: a single masked cross-lane max over the keep vector.
        ki = jnp.max(jnp.where(sel, keep_ref[...], 0.0))

        # Only surviving boxes suppress others: already-suppressed candidates
        # skip the IoU row computation and the full-width keep writeback.
        @pl.when(ki > 0.5)
        def _():
            # Box i's coords via one masked lane-reduce of the (4, K) slab --
            # no (K, K) suppression matrix, no transposes, no dynamic lane
            # indexing; the suppression row is built on the fly (pure VPU).
            bi = jnp.max(jnp.where(sel, boxes_ref[...], _NEG),
                         axis=1, keepdims=True)              # (4, 1)
            x1i = bi[0:1, :]
            y1i = bi[1:2, :]
            x2i = bi[2:3, :]
            y2i = bi[3:4, :]
            iw = jnp.maximum(jnp.minimum(x2, x2i) - jnp.maximum(x1, x1i), 0.0)
            ih = jnp.maximum(jnp.minimum(y2, y2i) - jnp.maximum(y1, y1i), 0.0)
            inter = iw * ih                                   # (1, K)
            union = area + (x2i - x1i) * (y2i - y1i) - inter
            # Division-free IoU > thr test, restricted to lower-scored boxes.
            sup = (inter > jnp.float32(iou_thr) * union) & (lane_ids > i)
            keep_ref[...] = jnp.where(sup, 0.0, keep_ref[...])

        return carry

    lax.fori_loop(0, n_valid, body, 0)


def _nms_keep(boxes_sorted, scores_sorted, conf_thr, iou_thr):
    """boxes_sorted: (C, 4, K), scores_sorted: (C, 1, K) -> keep mask (C, 1, K)."""
    C, _, K = boxes_sorted.shape
    kern = functools.partial(_nms_kernel,
                             conf_thr=float(conf_thr), iou_thr=float(iou_thr))
    # TODO(synk): on v7x, pltpu.CORE_PARALLEL on the class axis (or pl.core_map
    # over the 2-TC mesh) would split the per-class serial NMS across cores.
    return pl.pallas_call(
        kern,
        out_shape=jax.ShapeDtypeStruct((C, 1, K), jnp.float32),
        grid=(C,),
        in_specs=[pl.BlockSpec((None, 4, K), lambda c: (c, 0, 0)),
                  pl.BlockSpec((None, 1, K), lambda c: (c, 0, 0))],
        out_specs=pl.BlockSpec((None, 1, K), lambda c: (c, 0, 0)),
        compiler_params=pltpu.CompilerParams(
            dimension_semantics=("parallel",),
            vmem_limit_bytes=_vmem_limit_bytes()),
    )(boxes_sorted, scores_sorted)


# --------------------------------------------------------------------------
# Fused device pipeline (single jit, no host syncs)
# --------------------------------------------------------------------------
@functools.partial(
    jax.jit,
    static_argnames=("img_w", "img_h", "conf_thr", "iou_thr", "max_nms_candidates"))
def _detect_on_device(classification, regression, anchors, *, img_w, img_h,
                      conf_thr, iou_thr, max_nms_candidates=1024):
    _, A, _ = classification.shape
    Ap = _round_up(max(A, 128), 128)
    pad_a = Ap - A

    anc = jnp.transpose(anchors[0].astype(jnp.float32), (1, 0))        # (4, A)
    reg = jnp.transpose(regression[0].astype(jnp.float32), (1, 0))     # (4, A)
    anc_reg = jnp.concatenate([anc, reg], axis=0)                      # (8, A)
    if pad_a:
        anc_reg = jnp.pad(anc_reg, ((0, 0), (0, pad_a)))

    boxes_ca = _decode_and_clip(anc_reg, img_w, img_h)                 # (4, Ap)

    scores = jnp.transpose(classification[0].astype(jnp.float32), (1, 0))  # (C, A)
    if pad_a:
        scores = jnp.pad(scores, ((0, 0), (0, pad_a)), constant_values=_NEG)

    # Per-class top-k candidate selection (much cheaper than a full argsort at
    # realistic anchor counts).  max_nms_candidates=None keeps every anchor.
    if max_nms_candidates is None:
        K = Ap
    else:
        K = min(Ap, _round_up(int(max_nms_candidates), 128))
    scores_sorted, order = lax.top_k(scores, K)                        # (C, K) each
    # TODO(synk): the per-class box gather could move into the NMS kernel via
    # scalar-prefetched indices to avoid materializing (C, 4, K) in HBM.
    boxes_sorted = jnp.transpose(boxes_ca[:, order], (1, 0, 2))        # (C, 4, K)

    keep = _nms_keep(boxes_sorted, scores_sorted[:, None, :],
                     conf_thr, iou_thr)                                # (C, 1, K)
    boxes_out = jnp.transpose(boxes_sorted, (0, 2, 1))                 # (C, K, 4)
    return boxes_out, scores_sorted, keep[:, 0, :]


# --------------------------------------------------------------------------
# Detector forward (equivalent of DMANet_Detector.forward for batch size 1)
# --------------------------------------------------------------------------
def dmanet_detector_forward(classification, regression, anchors, img_batch,
                            conf_threshold, iou_threshold, max_nms_candidates=1024):
    """
    classification: (1, A, num_classes) f32
    regression:     (1, A, 4)           f32
    anchors:        (1, A, 4)           f32   (x1, y1, x2, y2)
    img_batch:      (1, C, H, W)        f32   (NCHW, only shape is used)
    Returns: np.ndarray (num_det, 6) = [x1, y1, x2, y2, score, class_idx]
    """
    B, A, num_classes = classification.shape
    assert B == 1, "reference forward squeezes the batch dim (batch size 1)"
    _, _, H, W = img_batch.shape

    boxes_out, scores_sorted, keep = _detect_on_device(
        classification, regression, anchors,
        img_w=float(W), img_h=float(H),
        conf_thr=float(conf_threshold), iou_thr=float(iou_threshold),
        max_nms_candidates=max_nms_candidates)

    # Single device -> host transfer of fixed-shape tensors.
    boxes_np, scores_np, keep_np = jax.device_get((boxes_out, scores_sorted, keep))
    keep_np = keep_np > 0.5

    # TODO(synk): the final gather/concat has a data-dependent output row count
    # (number of detections), so it is assembled on host like the reference loop.
    rows = []
    for c in range(num_classes):
        m = keep_np[c]
        if not m.any():
            continue
        b = boxes_np[c][m].astype(np.float32)
        s = scores_np[c][m].astype(np.float32)
        cls_col = np.full((s.shape[0], 1), float(c), dtype=np.float32)
        rows.append(np.concatenate([b, s[:, None], cls_col], axis=1))

    if rows:
        return np.concatenate(rows, axis=0).astype(np.float32)
    return np.zeros((0, 6), dtype=np.float32)


# --------------------------------------------------------------------------
if __name__ == "__main__":
    key = jax.random.PRNGKey(0)
    k1, k2, k3, k4 = jax.random.split(key, 4)

    B, A, num_classes = 1, 128, 4
    C, H, W = 3, 64, 64

    # deterministic synthetic anchors: x1,y1 in [0,48], w,h in [8,24]
    xy1 = jax.random.uniform(k1, (A, 2), minval=0.0, maxval=48.0)
    wh = jax.random.uniform(k2, (A, 2), minval=8.0, maxval=24.0)
    anchors = jnp.concatenate([xy1, xy1 + wh], axis=1)[None, :, :].astype(jnp.float32)

    regression = (0.5 * jax.random.normal(k3, (B, A, 4))).astype(jnp.float32)
    classification = jax.random.uniform(k4, (B, A, num_classes)).astype(jnp.float32)
    img_batch = jnp.zeros((B, C, H, W), dtype=jnp.float32)

    conf_threshold = 0.5
    iou_threshold = 0.5

    # Run the fused device pipeline once and block on the device result.
    dev_out = _detect_on_device(
        classification, regression, anchors,
        img_w=float(W), img_h=float(H),
        conf_thr=float(conf_threshold), iou_thr=float(iou_threshold),
        max_nms_candidates=1024)
    jax.block_until_ready(dev_out)

    out = dmanet_detector_forward(classification, regression, anchors, img_batch,
                                  conf_threshold, iou_threshold,
                                  max_nms_candidates=1024)

    assert out.ndim == 2 and out.shape[1] == 6
    # sanity: all kept scores above threshold, classes valid, boxes inside image
    if out.shape[0]:
        assert np.all(out[:, 4] > conf_threshold)
        assert np.all((out[:, 5] >= 0) & (out[:, 5] < num_classes))
        assert np.all(out[:, 0] >= 0) and np.all(out[:, 2] <= W)
        assert np.all(out[:, 1] >= 0) and np.all(out[:, 3] <= H)

    print("KERNEL_OK")
</pallas_src>

<mosaic_0001>
module attributes {stable_mosaic.version = 11 : i64} {
  func.func @_decode_clip_kernel(%arg0: i32, %arg1: memref<8x128xf32, #tpu.memory_space<vmem>>, %arg2: memref<4x128xf32, #tpu.memory_space<vmem>>) attributes {dimension_semantics = [#tpu.dimension_semantics<parallel>], iteration_bounds = array<i64: 1>, scalar_prefetch = 0 : i64, scratch_operands = 0 : i64, tpu.core_type = #tpu.core_type<tc>, window_params = [{transform_indices = @transform_0, window_bounds = array<i64: 8, 128>}, {transform_indices = @transform_1, window_bounds = array<i64: 4, 128>}]} {
    %c0 = arith.constant 0 : index
    %c0_0 = arith.constant 0 : index
    %0 = vector.load %arg1[%c0, %c0_0] : memref<8x128xf32, #tpu.memory_space<vmem>>, vector<2x128xf32>
    %c2 = arith.constant 2 : index
    %c0_1 = arith.constant 0 : index
    %1 = vector.load %arg1[%c2, %c0_1] : memref<8x128xf32, #tpu.memory_space<vmem>>, vector<2x128xf32>
    %2 = arith.subf %1, %0 : vector<2x128xf32>
    %cst = arith.constant 5.000000e-01 : f32
    %3 = vector.broadcast %cst : f32 to vector<2x128xf32>
    %4 = arith.mulf %3, %2 : vector<2x128xf32>
    %5 = arith.addf %0, %4 : vector<2x128xf32>
    %c4 = arith.constant 4 : index
    %c0_2 = arith.constant 0 : index
    %6 = vector.load %arg1[%c4, %c0_2] : memref<8x128xf32, #tpu.memory_space<vmem>>, vector<2x128xf32>
    %cst_3 = arith.constant 1.000000e-01 : f32
    %7 = vector.broadcast %cst_3 : f32 to vector<2x128xf32>
    %8 = arith.mulf %6, %7 : vector<2x128xf32>
    %c6 = arith.constant 6 : index
    %c0_4 = arith.constant 0 : index
    %9 = vector.load %arg1[%c6, %c0_4] : memref<8x128xf32, #tpu.memory_space<vmem>>, vector<2x128xf32>
    %cst_5 = arith.constant 2.000000e-01 : f32
    %10 = vector.broadcast %cst_5 : f32 to vector<2x128xf32>
    %11 = arith.mulf %9, %10 : vector<2x128xf32>
    %12 = arith.mulf %8, %2 : vector<2x128xf32>
    %13 = arith.addf %5, %12 : vector<2x128xf32>
    %14 = math.exp %11 : vector<2x128xf32>
    %15 = arith.mulf %14, %2 : vector<2x128xf32>
    %cst_6 = arith.constant 5.000000e-01 : f32
    %16 = vector.broadcast %cst_6 : f32 to vector<2x128xf32>
    %17 = arith.mulf %16, %15 : vector<2x128xf32>
    %18 = arith.subf %13, %17 : vector<2x128xf32>
    %cst_7 = arith.constant 5.000000e-01 : f32
    %19 = vector.broadcast %cst_7 : f32 to vector<2x128xf32>
    %20 = arith.mulf %19, %15 : vector<2x128xf32>
    %21 = arith.addf %13, %20 : vector<2x128xf32>
    %cst_8 = arith.constant 0.000000e+00 : f32
    %22 = vector.broadcast %cst_8 : f32 to vector<2x128xf32>
    %23 = arith.maximumf %18, %22 : vector<2x128xf32>
    %c0_9 = arith.constant 0 : index
    %c0_10 = arith.constant 0 : index
    %24 = vector.load %arg2[%c0_9, %c0_10] : memref<4x128xf32, #tpu.memory_space<vmem>>, vector<2x128xf32>
    tpu.vector_store %arg2[%c0_9, %c0_10], %23 {strides = array<i32>} : memref<4x128xf32, #tpu.memory_space<vmem>>, vector<2x128xf32>,
    %25 = vector.extract_strided_slice %21 {offsets = [0, 0], sizes = [1, 128], strides = [1, 1]} : vector<2x128xf32> to vector<1x128xf32>
    %cst_11 = arith.constant 6.400000e+01 : f32
    %26 = vector.broadcast %cst_11 : f32 to vector<1x128xf32>
    %27 = arith.minimumf %25, %26 : vector<1x128xf32>
    %c2_12 = arith.constant 2 : index
    %c0_13 = arith.constant 0 : index
    %28 = vector.load %arg2[%c2_12, %c0_13] : memref<4x128xf32, #tpu.memory_space<vmem>>, vector<1x128xf32>
    tpu.vector_store %arg2[%c2_12, %c0_13], %27 {strides = array<i32>} : memref<4x128xf32, #tpu.memory_space<vmem>>, vector<1x128xf32>,
    %29 = vector.extract_strided_slice %21 {offsets = [1, 0], sizes = [1, 128], strides = [1, 1]} : vector<2x128xf32> to vector<1x128xf32>
    %cst_14 = arith.constant 6.400000e+01 : f32
    %30 = vector.broadcast %cst_14 : f32 to vector<1x128xf32>
    %31 = arith.minimumf %29, %30 : vector<1x128xf32>
    %c3 = arith.constant 3 : index
    %c0_15 = arith.constant 0 : index
    %32 = vector.load %arg2[%c3, %c0_15] : memref<4x128xf32, #tpu.memory_space<vmem>>, vector<1x128xf32>
    tpu.vector_store %arg2[%c3, %c0_15], %31 {strides = array<i32>} : memref<4x128xf32, #tpu.memory_space<vmem>>, vector<1x128xf32>,
    return
  }
  func.func @transform_0(%arg0: i32) -> (i32, i32) {
    %c0_i32 = arith.constant 0 : i32
    %c0_i32_0 = arith.constant 0 : i32
    return %c0_i32, %arg0 : i32, i32
  }
  func.func @transform_1(%arg0: i32) -> (i32, i32) {
    %c0_i32 = arith.constant 0 : i32
    %c0_i32_0 = arith.constant 0 : i32
    return %c0_i32, %arg0 : i32, i32
  }
}

module attributes {stable_mosaic.version = 11 : i64} {
  func.func @_nms_kernel(%arg0: i32, %arg1: memref<1x4x128xf32, #tpu.memory_space<vmem>>, %arg2: memref<1x1x128xf32, #tpu.memory_space<vmem>>, %arg3: memref<1x1x128xf32, #tpu.memory_space<vmem>>) attributes {dimension_semantics = [#tpu.dimension_semantics<parallel>], iteration_bounds = array<i64: 4>, scalar_prefetch = 0 : i64, scratch_operands = 0 : i64, tpu.core_type = #tpu.core_type<tc>, window_params = [{transform_indices = @transform_0, window_bounds = array<i64: 1, 4, 128>}, {transform_indices = @transform_1, window_bounds = array<i64: 1, 1, 128>}, {transform_indices = @transform_2, window_bounds = array<i64: 1, 1, 128>}]} {
    %c0 = arith.constant 0 : index
    %c0_0 = arith.constant 0 : index
    %c0_1 = arith.constant 0 : index
    %0 = vector.load %arg1[%c0, %c0_0, %c0_1] : memref<1x4x128xf32, #tpu.memory_space<vmem>>, vector<1x1x128xf32>
    %1 = vector.shape_cast %0 : vector<1x1x128xf32> to vector<1x128xf32>
    %c0_2 = arith.constant 0 : index
    %c1 = arith.constant 1 : index
    %c0_3 = arith.constant 0 : index
    %2 = vector.load %arg1[%c0_2, %c1, %c0_3] : memref<1x4x128xf32, #tpu.memory_space<vmem>>, vector<1x1x128xf32>
    %3 = vector.shape_cast %2 : vector<1x1x128xf32> to vector<1x128xf32>
    %c0_4 = arith.constant 0 : index
    %c2 = arith.constant 2 : index
    %c0_5 = arith.constant 0 : index
    %4 = vector.load %arg1[%c0_4, %c2, %c0_5] : memref<1x4x128xf32, #tpu.memory_space<vmem>>, vector<1x1x128xf32>
    %5 = vector.shape_cast %4 : vector<1x1x128xf32> to vector<1x128xf32>
    %c0_6 = arith.constant 0 : index
    %c3 = arith.constant 3 : index
    %c0_7 = arith.constant 0 : index
    %6 = vector.load %arg1[%c0_6, %c3, %c0_7] : memref<1x4x128xf32, #tpu.memory_space<vmem>>, vector<1x1x128xf32>
    %7 = vector.shape_cast %6 : vector<1x1x128xf32> to vector<1x128xf32>
    %8 = arith.subf %5, %1 : vector<1x128xf32>
    %9 = arith.subf %7, %3 : vector<1x128xf32>
    %10 = arith.mulf %8, %9 : vector<1x128xf32>
    %c0_8 = arith.constant 0 : index
    %c0_9 = arith.constant 0 : index
    %c0_10 = arith.constant 0 : index
    %11 = vector.load %arg2[%c0_8, %c0_9, %c0_10] : memref<1x1x128xf32, #tpu.memory_space<vmem>>, vector<1x1x128xf32>
    %12 = vector.shape_cast %11 : vector<1x1x128xf32> to vector<1x128xf32>
    %cst = arith.constant 5.000000e-01 : f32
    %13 = vector.broadcast %cst : f32 to vector<1x128xf32>
    %14 = arith.cmpf ogt, %12, %13 : vector<1x128xf32>
    %15 = arith.extui %14 : vector<1x128xi1> to vector<1x128xi32>
    %16 = arith.sitofp %15 : vector<1x128xi32> to vector<1x128xf32>
    %c0_11 = arith.constant 0 : index
    %c0_12 = arith.constant 0 : index
    %c0_13 = arith.constant 0 : index
    %17 = vector.load %arg3[%c0_11, %c0_12, %c0_13] : memref<1x1x128xf32, #tpu.memory_space<vmem>>, vector<1x1x128xf32>
    %18 = vector.shape_cast %17 : vector<1x1x128xf32> to vector<1x128xf32>
    %19 = vector.shape_cast %16 : vector<1x128xf32> to vector<1x1x128xf32>
    tpu.vector_store %arg3[%c0_11, %c0_12, %c0_13], %19 {strides = array<i32>} : memref<1x1x128xf32, #tpu.memory_space<vmem>>, vector<1x1x128xf32>,
    %20 = arith.extui %14 : vector<1x128xi1> to vector<1x128xi32>
    %21 = vector.shape_cast %20 : vector<1x128xi32> to vector<1x1x128xi32>
    %cst_14 = arith.constant dense<0> : vector<1xi32>
    %22 = vector.multi_reduction <add>, %21, %cst_14 [1, 2] : vector<1x1x128xi32> to vector<1xi32>
    %23 = vector.shape_cast %22 : vector<1xi32> to vector<1x1x1xi32>
    %24 = vector.extract %23[0, 0, 0] : i32 from vector<1x1x1xi32>
    %25 = tpu.iota {dimensions = array<i32: 1>} : vector<1x128xi32>
    %c0_i32 = arith.constant 0 : i32
    %c0_i32_15 = arith.constant 0 : i32
    %26 = arith.subi %24, %c0_i32_15 : i32
    %27 = arith.addi %c0_i32_15, %26 : i32
    %c1_i32 = arith.constant 1 : i32
    scf.for %arg4 = %c0_i32_15 to %27 step %c1_i32  : i32 {
      %28 = vector.broadcast %arg4 : i32 to vector<1x128xi32>
      %29 = arith.cmpi eq, %25, %28 : vector<1x128xi32>
      %c0_16 = arith.constant 0 : index
      %c0_17 = arith.constant 0 : index
      %c0_18 = arith.constant 0 : index
      %30 = vector.load %arg3[%c0_16, %c0_17, %c0_18] : memref<1x1x128xf32, #tpu.memory_space<vmem>>, vector<1x1x128xf32>
      %31 = vector.shape_cast %30 : vector<1x1x128xf32> to vector<1x128xf32>
      %cst_19 = arith.constant 0.000000e+00 : f32
      %32 = vector.broadcast %cst_19 : f32 to vector<1x128xf32>
      %33 = arith.select %29, %31, %32 : vector<1x128xi1>, vector<1x128xf32>
      %34 = vector.shape_cast %33 : vector<1x128xf32> to vector<1x1x128xf32>
      %cst_20 = arith.constant dense<0xFF800000> : vector<1xf32>
      %35 = vector.multi_reduction <maximumf>, %34, %cst_20 [1, 2] : vector<1x1x128xf32> to vector<1xf32>
      %36 = vector.shape_cast %35 : vector<1xf32> to vector<1x1x1xf32>
      %37 = vector.extract %36[0, 0, 0] : f32 from vector<1x1x1xf32>
      %cst_21 = arith.constant 5.000000e-01 : f32
      %38 = arith.cmpf ogt, %37, %cst_21 : f32
      %39 = arith.extui %38 : i1 to i32
      %c0_i32_22 = arith.constant 0 : i32
      %40 = arith.cmpi ne, %39, %c0_i32_22 : i32
      scf.if %40 {
        %c0_23 = arith.constant 0 : index
        %c0_24 = arith.constant 0 : index
        %c0_25 = arith.constant 0 : index
        %41 = vector.load %arg1[%c0_23, %c0_24, %c0_25] : memref<1x4x128xf32, #tpu.memory_space<vmem>>, vector<1x4x128xf32>
        %42 = vector.shape_cast %41 : vector<1x4x128xf32> to vector<4x128xf32>
        %cst_26 = arith.constant -1.000000e+30 : f32
        %43 = vector.shape_cast %29 : vector<1x128xi1> to vector<1x128xi1>
        %44 = vector.broadcast %43 : vector<1x128xi1> to vector<4x128xi1>
        %45 = vector.broadcast %cst_26 : f32 to vector<4x128xf32>
        %46 = arith.select %44, %42, %45 : vector<4x128xi1>, vector<4x128xf32>
        %cst_27 = arith.constant dense<0xFF800000> : vector<4xf32>
        %47 = vector.multi_reduction <maximumf>, %46, %cst_27 [1] : vector<4x128xf32> to vector<4xf32>
        %48 = vector.shape_cast %47 : vector<4xf32> to vector<4x1xf32>
        %49 = vector.extract_strided_slice %48 {offsets = [0, 0], sizes = [1, 1], strides = [1, 1]} : vector<4x1xf32> to vector<1x1xf32>
        %50 = vector.extract_strided_slice %48 {offsets = [1, 0], sizes = [1, 1], strides = [1, 1]} : vector<4x1xf32> to vector<1x1xf32>
        %51 = vector.extract_strided_slice %48 {offsets = [2, 0], sizes = [1, 1], strides = [1, 1]} : vector<4x1xf32> to vector<1x1xf32>
        %52 = vector.extract_strided_slice %48 {offsets = [3, 0], sizes = [1, 1], strides = [1, 1]} : vector<4x1xf32> to vector<1x1xf32>
        %53 = vector.broadcast %51 : vector<1x1xf32> to vector<1x128xf32>
        %54 = arith.minimumf %5, %53 : vector<1x128xf32>
        %55 = vector.broadcast %49 : vector<1x1xf32> to vector<1x128xf32>
        %56 = arith.maximumf %1, %55 : vector<1x128xf32>
        %57 = arith.subf %54, %56 : vector<1x128xf32>
        %cst_28 = arith.constant 0.000000e+00 : f32
        %58 = vector.broadcast %cst_28 : f32 to vector<1x128xf32>
        %59 = arith.maximumf %57, %58 : vector<1x128xf32>
        %60 = vector.broadcast %52 : vector<1x1xf32> to vector<1x128xf32>
        %61 = arith.minimumf %7, %60 : vector<1x128xf32>
        %62 = vector.broadcast %50 : vector<1x1xf32> to vector<1x128xf32>
        %63 = arith.maximumf %3, %62 : vector<1x128xf32>
        %64 = arith.subf %61, %63 : vector<1x128xf32>
        %cst_29 = arith.constant 0.000000e+00 : f32
        %65 = vector.broadcast %cst_29 : f32 to vector<1x128xf32>
        %66 = arith.maximumf %64, %65 : vector<1x128xf32>
        %67 = arith.mulf %59, %66 : vector<1x128xf32>
        %68 = arith.subf %51, %49 : vector<1x1xf32>
        %69 = arith.subf %52, %50 : vector<1x1xf32>
        %70 = arith.mulf %68, %69 : vector<1x1xf32>
        %71 = vector.broadcast %70 : vector<1x1xf32> to vector<1x128xf32>
        %72 = arith.addf %10, %71 : vector<1x128xf32>
        %73 = arith.subf %72, %67 : vector<1x128xf32>
        %cst_30 = arith.constant 5.000000e-01 : f32
        %74 = vector.broadcast %cst_30 : f32 to vector<1x128xf32>
        %75 = arith.mulf %74, %73 : vector<1x128xf32>
        %76 = arith.cmpf ogt, %67, %75 : vector<1x128xf32>
        %77 = vector.broadcast %arg4 : i32 to vector<1x128xi32>
        %78 = arith.cmpi sgt, %25, %77 : vector<1x128xi32>
        %79 = arith.andi %76, %78 : vector<1x128xi1>
        %c0_31 = arith.constant 0 : index
        %c0_32 = arith.constant 0 : index
        %c0_33 = arith.constant 0 : index
        %80 = vector.load %arg3[%c0_31, %c0_32, %c0_33] : memref<1x1x128xf32, #tpu.memory_space<vmem>>, vector<1x1x128xf32>
        %81 = vector.shape_cast %80 : vector<1x1x128xf32> to vector<1x128xf32>
        %cst_34 = arith.constant 0.000000e+00 : f32
        %82 = vector.broadcast %cst_34 : f32 to vector<1x128xf32>
        %83 = arith.select %79, %82, %81 : vector<1x128xi1>, vector<1x128xf32>
        %c0_35 = arith.constant 0 : index
        %c0_36 = arith.constant 0 : index
        %c0_37 = arith.constant 0 : index
        %84 = vector.load %arg3[%c0_35, %c0_36, %c0_37] : memref<1x1x128xf32, #tpu.memory_space<vmem>>, vector<1x1x128xf32>
        %85 = vector.shape_cast %84 : vector<1x1x128xf32> to vector<1x128xf32>
        %86 = vector.shape_cast %83 : vector<1x128xf32> to vector<1x1x128xf32>
        tpu.vector_store %arg3[%c0_35, %c0_36, %c0_37], %86 {strides = array<i32>} : memref<1x1x128xf32, #tpu.memory_space<vmem>>, vector<1x1x128xf32>,
      } else {
      }
    }
    return
  }
  func.func @transform_0(%arg0: i32) -> (i32, i32, i32) {
    %c0_i32 = arith.constant 0 : i32
    %c0_i32_0 = arith.constant 0 : i32
    %c0_i32_1 = arith.constant 0 : i32
    return %arg0, %c0_i32, %c0_i32_0 : i32, i32, i32
  }
  func.func @transform_1(%arg0: i32) -> (i32, i32, i32) {
    %c0_i32 = arith.constant 0 : i32
    %c0_i32_0 = arith.constant 0 : i32
    %c0_i32_1 = arith.constant 0 : i32
    return %arg0, %c0_i32, %c0_i32_0 : i32, i32, i32
  }
  func.func @transform_2(%arg0: i32) -> (i32, i32, i32) {
    %c0_i32 = arith.constant 0 : i32
    %c0_i32_0 = arith.constant 0 : i32
    %c0_i32_1 = arith.constant 0 : i32
    return %arg0, %c0_i32, %c0_i32_0 : i32, i32, i32
  }
}

</mosaic_0001>

<llo_original>
// kernel: _detect_on_device.2
$region0: #{_detect_on_device.2}
  #allocation0 [shape = 'u32[]', space=smem, size = 0x4, offset = 0x4, fixed_abs, tag = 'smem constant byte address 0x4 - core index']
  #allocation1 [shape = 'u32[72,128]{1,0:T(1,128)}', space=vmem, size = 0x9000, scoped, tag = 'internal scratch']
  %s0 = inlined_call_operand.vmem [shape: f32[8,128], index: 0, kind: input, shape index: {}]
  %s1 = inlined_call_operand.vmem [shape: f32[4,128], index: 1, kind: output, shape index: {}]
  %s2 = sld [smem:[#allocation0]]
  $region14: #{_detect_on_device.2} parent=0
    _
  %s4 = ssub.s32 1, %s2
  %s5 = scalar_select 0, %s4, %s2
  // Predicated region
  $region2: #{_detect_on_device.2} parent=0 // pred_check
    _
  $region3: #{_detect_on_device.2} parent=0 // pred_check_branch
    %7 = sbr.rel (0) target = $region5
  $region4: #{_detect_on_device.2} parent=0 // pred_region
    _
  $region5: #{_detect_on_device.2} parent=0 // pred_fallthru
    _
  %v8 = vld [vmem:[%s0] sm:$0x3]
  %v9 = vld [vmem:[%s0 + $0x2] sm:$0x3]
  %v10 = vsub.f32 %v9, %v8
  %v11 = vmul.f32 %v10, 0.5
  %v12 = vadd.f32 %v8, %v11
  %v13 = vld [vmem:[%s0 + $0x4] sm:$0x3]
  %v14 = vmul.f32 %v13, 0.1
  %v15 = vld [vmem:[%s0 + $0x6] sm:$0x3]
  %v16 = vmul.f32 %v15, 0.2
  %v17 = vmul.f32 %v14, %v10
  %v18 = vadd.f32 %v12, %v17
  %v19 = vmul.f32 %v16, 1.442695
  %v20 = vpow.pop %v19
  %v21 = vmul.f32 %v20, %v10
  %v22 = vmul.f32 %v21, 0.5
  %v23 = vsub.f32 %v18, %v22
  %v24 = vadd.f32 %v18, %v22
  %v25 = vmax.f32 %v23, 0.0
  %26 = vst [vmem:[%s1] sm:$0x3] %v25
  %v27 = vmin.f32 %v24, 64.0
  %28 = vst [vmem:[%s1 + $0x2] sm:$0x1] %v27
  %29 = vst [vmem:[%s1 + $0x2] sm:$0x2] %v27
  // Predicated region
  $region6: #{_detect_on_device.2} parent=0 // pred_check
    _
  $region7: #{_detect_on_device.2} parent=0 // pred_check_branch
    %31 = sbr.rel (0) target = $region9
  $region8: #{_detect_on_device.2} parent=0 // pred_region
    _
  $region9: #{_detect_on_device.2} parent=0 // pred_fallthru
    _
  // Predicated region
  $region10: #{_detect_on_device.2} parent=0 // pred_check
    _
  $region11: #{_detect_on_device.2} parent=0 // pred_check_branch
    %33 = sbr.rel (0) target = $region13
  $region12: #{_detect_on_device.2} parent=0 // pred_region
    _
  $region13: #{_detect_on_device.2} parent=0 // pred_fallthru
    _

// kernel: _detect_on_device.3
$region0: #{_detect_on_device.3}
  #allocation0 [shape = 'u32[]', space=smem, size = 0x4, offset = 0x4, fixed_abs, tag = 'smem constant byte address 0x4 - core index']
  #allocation1 [shape = 'u32[72,128]{1,0:T(1,128)}', space=vmem, size = 0x9000, scoped, tag = 'internal scratch']
  %s0 = inlined_call_operand.vmem [shape: f32[4,4,128], index: 0, kind: input, shape index: {}]
  %s1 = inlined_call_operand.vmem [shape: f32[4,1,128], index: 1, kind: input, shape index: {}]
  %s2 = inlined_call_operand.hbm [shape: f32[4,1,128], index: 2, kind: output, shape index: {}]
  %s3 = sld [smem:[#allocation0]]
  $region52: #{_detect_on_device.3} parent=0
    _
  %s5 = ssub.s32 1, %s3
  %s6 = scalar_select 0, %s5, %s3
  $region1: #{_detect_on_device.3} parent=0
    #allocation2 [shape = 'u8[1024]{0}', space=vmem, size = 0x400, scoped, tag = 'output window, operand 0']
    #allocation3 [shape = 's32[2]{0}', space=sflag, size = 0x8, scoped, tag = 'scoped memory for _detect_on_device.3']
    %7 = vsyncpa [#allocation3], 0
    %s8 = scalar_lea.sflag [#allocation3], 1
    %9 = vsyncpa %s8, 0
    loop: start=0, step=1, limit=6
    $region2: #{_detect_on_device.3} parent=1 // loop_pre_header
      _
    $region3: #{_detect_on_device.3} parent=1 // loop_header
      %s11 = sphi 0, %s15
      %p12 = scmp.ge.s32.totalorder %s11, 6
      %s21 = sphi 0, %s23
      %s24 = sphi 0, %s21
      %s25 = sphi 0, %s24
      %s41 = sphi 0, %s25
      %s47 = sphi 0, %s49
      %s50 = sphi 0, %s47
      %s51 = sphi 0, %s50
      %s67 = sphi 0, %s51
      %s73 = sphi 0, %s75
      %s76 = sphi 0, %s73
      %s77 = sphi 0, %s76
      %s93 = sphi 0, %s77
    $region4: #{_detect_on_device.3} parent=1 // loop_header_branch
      %14 = sbr.rel (%p12) target = $region8
    $region5: #{_detect_on_device.3} parent=1 // loop_body
      %s16 = ssub.s32 %s11, 1
      %s17 = ssub.s32 %s11, 2
      %s18 = sadd.s32 %s11, 1
      %s19 = ssub.s32 %s11, %s18
      %p20 = scmp.eq.s32.totalorder %s19, 0
      %s22 = sadd.s32 %s21, 1
      %s23 = scalar_select %p20, %s21, %s22
      %p26 = pneg %p20
      %p27 = scmp.eq.s32.totalorder %s11, 3
      %p28 = por %p26, %p27
      %p29 = scmp.ne.s32.totalorder %s21, %s24
      %p30 = scmp.eq.s32.totalorder %s11, 0
      %p31 = por %p29, %p30
      %p32 = scmp.ne.s32.totalorder %s21, %s24
      %p33 = scmp.eq.s32.totalorder %s16, 3
      %p34 = por %p32, %p33
      %p35 = scmp.ne.s32.totalorder %s24, %s25
      %p36 = scmp.eq.s32.totalorder %s16, 0
      %p37 = por %p35, %p36
      %p38 = scmp.ne.s32.totalorder %s24, %s25
      %p39 = scmp.eq.s32.totalorder %s17, 3
      %p40 = por %p38, %p39
      %p42 = scmp.ne.s32.totalorder %s25, %s41
      %p43 = scmp.eq.s32.totalorder %s17, 0
      %p44 = por %p42, %p43
      %s45 = ssub.s32 %s11, %s18
      %p46 = scmp.eq.s32.totalorder %s45, 0
      %s48 = sadd.s32 %s47, 1
      %s49 = scalar_select %p46, %s47, %s48
      %p52 = pneg %p46
      %p53 = scmp.eq.s32.totalorder %s11, 3
      %p54 = por %p52, %p53
      %p55 = scmp.ne.s32.totalorder %s47, %s50
      %p56 = scmp.eq.s32.totalorder %s11, 0
      %p57 = por %p55, %p56
      %p58 = scmp.ne.s32.totalorder %s47, %s50
      %p59 = scmp.eq.s32.totalorder %s16, 3
      %p60 = por %p58, %p59
      %p61 = scmp.ne.s32.totalorder %s50, %s51
      %p62 = scmp.eq.s32.totalorder %s16, 0
      %p63 = por %p61, %p62
      %p64 = scmp.ne.s32.totalorder %s50, %s51
      %p65 = scmp.eq.s32.totalorder %s17, 3
      %p66 = por %p64, %p65
      %p68 = scmp.ne.s32.totalorder %s51, %s67
      %p69 = scmp.eq.s32.totalorder %s17, 0
      %p70 = por %p68, %p69
      %s71 = ssub.s32 %s11, %s18
      %p72 = scmp.eq.s32.totalorder %s71, 0
      %s74 = sadd.s32 %s73, 1
      %s75 = scalar_select %p72, %s73, %s74
      %p78 = pneg %p72
      %p79 = scmp.eq.s32.totalorder %s11, 3
      %p80 = por %p78, %p79
      %p81 = scmp.ne.s32.totalorder %s73, %s76
      %p82 = scmp.eq.s32.totalorder %s11, 0
      %p83 = por %p81, %p82
      %p84 = scmp.ne.s32.totalorder %s73, %s76
      %p85 = scmp.eq.s32.totalorder %s16, 3
      %p86 = por %p84, %p85
      %p87 = scmp.ne.s32.totalorder %s76, %s77
      %p88 = scmp.eq.s32.totalorder %s16, 0
      %p89 = por %p87, %p88
      %p90 = scmp.ne.s32.totalorder %s76, %s77
      %p91 = scmp.eq.s32.totalorder %s17, 3
      %p92 = por %p90, %p91
      %p94 = scmp.ne.s32.totalorder %s77, %s93
      %p95 = scmp.eq.s32.totalorder %s17, 0
      %p96 = por %p94, %p95
      %p97 = scmp.le.s32.totalorder 1, %s11
      %p98 = scmp.lt.s32.totalorder %s11, 5
      %p99 = pnand %p97, %p98
      %p100 = pneg %p99
      // Predicated region
      $region9: #{_detect_on_device.3} parent=5 // pred_check
        _
      $region10: #{_detect_on_device.3} parent=5 // pred_check_branch
        %102 = sbr.rel (%p99) target = $region12
      $region11: #{_detect_on_device.3} parent=5 // pred_region
        %s103 = ssub.s32 %s11, 1
      $region12: #{_detect_on_device.3} parent=5 // pred_fallthru
        _
      %p104 = scmp.lt.s32.totalorder %s11, 4
      // Predicated region
      $region13: #{_detect_on_device.3} parent=5 // pred_check
        %p105 = pneg %p104
      $region14: #{_detect_on_device.3} parent=5 // pred_check_branch
        %107 = sbr.rel (%p105) target = $region16
      $region15: #{_detect_on_device.3} parent=5 // pred_region
        // Predicated region
        $region17: #{_detect_on_device.3} parent=15 // pred_check
          %p108 = pneg %p31
        $region18: #{_detect_on_device.3} parent=15 // pred_check_branch
          %110 = sbr.rel (%p108) target = $region20
        $region19: #{_detect_on_device.3} parent=15 // pred_region
          %p111 = scmp.lt.s32.totalorder %s11, 3
          %s112 = scalar_select %p111, %s11, 3
          %s113 = smul.addr %s112, 4
          %s114 = scalar_lea.vmem %s0, %s113
        $region20: #{_detect_on_device.3} parent=15 // pred_fallthru
          _
        // Predicated region
        $region21: #{_detect_on_device.3} parent=15 // pred_check
          %p115 = pneg %p57
        $region22: #{_detect_on_device.3} parent=15 // pred_check_branch
          %117 = sbr.rel (%p115) target = $region24
        $region23: #{_detect_on_device.3} parent=15 // pred_region
          %p118 = scmp.lt.s32.totalorder %s11, 3
          %s119 = scalar_select %p118, %s11, 3
          %s120 = scalar_lea.vmem %s1, %s119
        $region24: #{_detect_on_device.3} parent=15 // pred_fallthru
          _
      $region16: #{_detect_on_device.3} parent=5 // pred_fallthru
        _
      %p121 = scmp.le.s32.totalorder 1, %s11
      %p122 = scmp.lt.s32.totalorder %s11, 5
      %p123 = pnand %p121, %p122
      %p124 = pneg %p123
      // Predicated region
      $region25: #{_detect_on_device.3} parent=5 // pred_check
        _
      $region26: #{_detect_on_device.3} parent=5 // pred_check_branch
        %126 = sbr.rel (%p123) target = $region28
      $region27: #{_detect_on_device.3} parent=5 // pred_region
        %s127 = ssub.s32 %s11, 1
        %p128 = scmp.lt.s32.totalorder %s16, 3
        %s129 = scalar_select %p128, %s16, 3
        %s130 = smul.addr %s129, 4
        %s131 = scalar_lea.vmem %s0, %s130
        %p132 = pneg %p37
        %p133 = pneg %p34
        %p134 = scmp.lt.s32.totalorder %s16, 3
        %s135 = scalar_select %p134, %s16, 3
        %s136 = scalar_lea.vmem %s1, %s135
        %p137 = pneg %p63
        %p138 = pneg %p60
        %p139 = pneg %p89
        %p140 = pneg %p86
        %s141 = sand.u32 %s76, 1
        %s142 = scalar_lea.sflag [#allocation3], %s141
        %s143 = sand.u32 %s76, 1
        %s144 = scalar_lea.vmem [#allocation2], %s143
        %p145 = scmp.lt.s32.totalorder %s16, 3
        %s146 = scalar_select %p145, %s16, 3
        %s147 = smul.addr %s146, 4
        %s148 = scalar_lea.vmem %s0, %s147
        %p149 = scmp.lt.s32.totalorder %s16, 3
        %s150 = scalar_select %p149, %s16, 3
        %s151 = scalar_lea.vmem %s1, %s150
        %v152 = vld [vmem:[%s148] sm:$0x1]
        %v153 = vld [vmem:[%s148 + $0x1] sm:$0x1]
        %v154 = vld [vmem:[%s148 + $0x2] sm:$0x1]
        %v155 = vld [vmem:[%s148 + $0x3] sm:$0x1]
        %v156 = vsub.f32 %v154, %v152
        %v157 = vsub.f32 %v155, %v153
        %v158 = vmul.f32 %v156, %v157
        %v159 = vld [vmem:[%s151] sm:$0x1]
        %vm160 = vcmp.gt.f32.partialorder %v159, 0.5
        %v161 = vsel %vm160, 1, 0
        %v162 = vcvt.s32.f32 %v161
        %163 = vst [vmem:[%s144] sm:$0x1] %v162
        %vm164 = vcmask 1040384
        %v165 = vsel %vm164, %v161, 0
        %v166 = vand.u32 %v165, 65535
        %v167 = vshrl.u32 %v165, 16
        %v168 = vcvt.s32.f32 %v166
        %v169 = vcvt.s32.f32 %v167
        %170 = vadd.xlane.f32.xlu0 %v168
        %v171 = vpop.xlane.xlu0 %170
        %172 = vadd.xlane.f32.xlu0 %v169
        %v173 = vpop.xlane.xlu0 %172
        %v174 = vcvt.f32.s32 %v171
        %v175 = vcvt.f32.s32 %v173
        %v176 = vshll.u32 %v175, 16
        %v177 = vadd.s32 %v176, %v174
        %v178 = vrot.slane %v177, 4
        %v179 = vadd.s32 %v177, %v178
        %v180 = vrot.slane %v179, 2
        %v181 = vadd.s32 %v179, %v180
        %v182 = vrot.slane %v181, 1
        %v183 = vadd.s32 %v181, %v182
        %s184 = vtos %v183
        %v185 = vlaneseq
        %v186 = vand.u32 %v185, 127
        // While loop
        $region29: #{_detect_on_device.3} parent=27 // loop_pre_header
          _
        $region30: #{_detect_on_device.3} parent=27 // loop_header
          %s188 = sphi 0, %s190
          %p189 = scmp.ge.s32.totalorder %s188, %s184
        $region31: #{_detect_on_device.3} parent=27 // loop_header_branch
          %192 = sbr.rel (%p189) target = $region35
        $region32: #{_detect_on_device.3} parent=27 // loop_body
          %v193 = vstv %s188
          %vm194 = vcmp.eq.s32.totalorder %v186, %v193
          %v195 = vld [vmem:[%s144] sm:$0x1]
          %v196 = vsel %vm194, %v195, 0.0
          %v197 = vsel %vm164, %v196, -inf
          %198 = vmax.xlane.f32.xlu0 %v197
          %v199 = vpop.xlane.xlu0 %198
          %v200 = vrot.slane %v199, 4
          %v201 = vmax.f32 %v199, %v200
          %v202 = vrot.slane %v201, 2
          %v203 = vmax.f32 %v201, %v202
          %v204 = vrot.slane %v203, 1
          %v205 = vmax.f32 %v203, %v204
          %s206 = vtos %v205
          %p207 = scmp.gt.f32.partialorder %s206, 0.5
          // Predicated region
          $region36: #{_detect_on_device.3} parent=32 // pred_check
            %p208 = pneg %p207
          $region37: #{_detect_on_device.3} parent=32 // pred_check_branch
            %210 = sbr.rel (%p208) target = $region39
          $region38: #{_detect_on_device.3} parent=32 // pred_region
            %v211 = vld [vmem:[%s148] sm:$0xf]
            %v212 = vsel %vm194, 1, 0
            %vm213 = vcmp.eq.s32.totalorder %v212, 1
            %v214 = vsel %vm213, %v211, -1e+30
            %vm215 = vcmask 1043456
            %v216 = vsel %vm215, %v214, -inf
            %217 = vmax.xlane.f32.xlu0 %v216
            %v218 = vpop.xlane.xlu0 %217
            %v220 = vrot.slane %v218, 2
            %v222 = vmin.f32 %v154, %v220
            %v223 = vmax.f32 %v152, %v218
            %v224 = vsub.f32 %v222, %v223
            %v225 = vmax.f32 %v224, 0.0
            %v226 = vrot.slane %v218, 3
            %v228 = vmin.f32 %v155, %v226
            %v229 = vrot.slane %v218, 1
            %v231 = vmax.f32 %v153, %v229
            %v232 = vsub.f32 %v228, %v231
            %v233 = vmax.f32 %v232, 0.0
            %v234 = vmul.f32 %v225, %v233
            %v235 = vrot.slane %v218, 6
            %v237 = vsub.f32 %v218, %v235
            %v239 = vrot.slane %v237, 1
            %v241 = vmul.f32 %v237, %v239
            %243 = vset.pattern.permute.xlu0 0
            %244 = vperm.xlu0 %243, %v241
            %v245 = vpop.permute.xlu0 %244
            %v246 = vrot.slane %v245, 2
            %v248 = vadd.f32 %v158, %v246
            %v249 = vsub.f32 %v248, %v234
            %v250 = vmul.f32 %v249, 0.5
            %vm251 = vcmp.gt.f32.partialorder %v234, %v250
            %vm252 = vcmp.gt.s32.totalorder %v186, %v193
            %vm253 = vmand %vm251, %vm252
            %v254 = vld [vmem:[%s144] sm:$0x1]
            %v255 = vsel %vm253, 0.0, %v254
            %256 = vst [vmem:[%s144] sm:$0x1] %v255
          $region39: #{_detect_on_device.3} parent=32 // pred_fallthru
            _
        $region33: #{_detect_on_device.3} parent=27 // loop_footer
          %s190 = sadd.s32 %s188, 1
        $region34: #{_detect_on_device.3} parent=27 // loop_footer_branch
          %187 = sbr.rel target = $region30
        $region35: #{_detect_on_device.3} parent=27 // loop_exit
          _
        %s257 = sand.u32 %s76, 1
        %s258 = scalar_lea.sflag [#allocation3], %s257
        %s259 = sand.u32 %s76, 1
        %s260 = scalar_lea.vmem [#allocation2], %s259
        // Predicated region
        $region40: #{_detect_on_device.3} parent=27 // pred_check
          %p261 = pneg %p86
        $region41: #{_detect_on_device.3} parent=27 // pred_check_branch
          %263 = sbr.rel (%p261) target = $region43
        $region42: #{_detect_on_device.3} parent=27 // pred_region
          %265 = vsyncadd %s258, 0
          %s266 = scalar_lea.hbm %s2, %s16
          %s268 = sshll.u32 %s260, 4
          %s269 = int_to_ptr.vmem [resolvable:$true] %s268
          %s270 = sshll.u32 %s266, 4
          %s271 = int_to_ptr.hbm [resolvable:$true] %s270
          %273 = dma.vmem_to_hbm [thread:$0]  %s269, 16, %s271, %s258
        $region43: #{_detect_on_device.3} parent=27 // pred_fallthru
          _
      $region28: #{_detect_on_device.3} parent=5 // pred_fallthru
        _
      %p274 = scmp.le.s32.totalorder 2, %s11
      // Predicated region
      $region44: #{_detect_on_device.3} parent=5 // pred_check
        %p275 = pneg %p274
      $region45: #{_detect_on_device.3} parent=5 // pred_check_branch
        %277 = sbr.rel (%p275) target = $region47
      $region46: #{_detect_on_device.3} parent=5 // pred_region
        %s278 = ssub.s32 %s11, 2
        // Predicated region
        $region48: #{_detect_on_device.3} parent=46 // pred_check
          %p279 = pneg %p92
        $region49: #{_detect_on_device.3} parent=46 // pred_check_branch
          %281 = sbr.rel (%p279) target = $region51
        $region50: #{_detect_on_device.3} parent=46 // pred_region
          %s282 = sand.u32 %s77, 1
          %s283 = scalar_lea.sflag [#allocation3], %s282
          %s284 = sand.u32 %s77, 1
          %s285 = scalar_lea.vmem [#allocation2], %s284
          %287 = dma.done %s283, 16
        $region51: #{_detect_on_device.3} parent=46 // pred_fallthru
          _
      $region47: #{_detect_on_device.3} parent=5 // pred_fallthru
        _
    $region6: #{_detect_on_device.3} parent=1 // loop_footer
      %s15 = sadd.s32 1, %s11
    $region7: #{_detect_on_device.3} parent=1 // loop_footer_branch
      %10 = sbr.rel target = $region3
    $region8: #{_detect_on_device.3} parent=1 // loop_exit
      _
    %288 = vsyncpa [#allocation3], 1
    %s289 = scalar_lea.sflag [#allocation3], 1
    %290 = vsyncpa %s289, 1

</llo_original>
